<compile_context>
chip_gen: v6e
topology: v6e:2x2x1
jax: 0.10.0
libtpu: 0.0.40
codegen_flags: <defaults>
</compile_context>

<pallas_src>
import jax
import jax.numpy as jnp
from jax.experimental import pallas as pl
from jax.experimental.pallas import tpu as pltpu


def _round_up(x, m):
    return ((x + m - 1) // m) * m


def _matmul_kernel(z_ref, w_ref, o_ref):
    # Canonical tiled matmul with the reduction (K) axis as the innermost
    # ("arbitrary") grid axis.  The output block index is constant over k, so
    # o_ref is resident and used directly as the f32 accumulator.
    @pl.when(pl.program_id(2) == 0)
    def _():
        o_ref[...] = jnp.zeros_like(o_ref)

    o_ref[...] += jnp.dot(
        z_ref[...], w_ref[...], preferred_element_type=jnp.float32
    )


def _tiled_matmul_f32(z, w, *, tm_max=256, tn_max=256, tk_max=512):
    """out = z @ w, f32 accumulation / f32 output, tiled for TPU."""
    M, K = z.shape
    K2, N = w.shape
    assert K == K2

    # Tile sizes: multiples of (8, 128); 256 granularity is MXU-friendly on
    # v6e/v7x and a clean multiple of v5e's 128-deep MXU.
    TM = min(tm_max, _round_up(M, 8))
    TN = min(tn_max, _round_up(N, 128))       # lane-dense output stores
    Mp = _round_up(M, TM)
    Np = _round_up(N, TN)
    if K <= 2 * tk_max:
        TK, Kp = K, K                          # single full-K block
    else:
        TK = tk_max
        Kp = _round_up(K, TK)

    zp = z if (Mp == M and Kp == K) else jnp.pad(z, ((0, Mp - M), (0, Kp - K)))
    wp = w if (Kp == K and Np == N) else jnp.pad(w, ((0, Kp - K), (0, Np - N)))

    grid = (Mp // TM, Np // TN, Kp // TK)
    itemsize = zp.dtype.itemsize

    out = pl.pallas_call(
        _matmul_kernel,
        out_shape=jax.ShapeDtypeStruct((Mp, Np), jnp.float32),
        grid_spec=pltpu.PrefetchScalarGridSpec(
            num_scalar_prefetch=0,
            grid=grid,
            in_specs=[
                pl.BlockSpec((TM, TK), lambda i, j, k: (i, k)),   # z tile
                pl.BlockSpec((TK, TN), lambda i, j, k: (k, j)),   # W tile
            ],
            out_specs=pl.BlockSpec((TM, TN), lambda i, j, k: (i, j)),
        ),
        compiler_params=pltpu.CompilerParams(
            dimension_semantics=("parallel", "parallel", "arbitrary"),
            vmem_limit_bytes=32 * 1024 * 1024,   # safe on v5e/v6e/v7x; tiles are small
        ),
        cost_estimate=pl.CostEstimate(
            flops=2 * Mp * Np * Kp,
            transcendentals=0,
            bytes_accessed=zp.size * itemsize + wp.size * itemsize + Mp * Np * 4,
        ),
    )(zp, wp)
    return out[:M, :N]


def mix_linear(x, alpha, w, b=None, *, compute_dtype=jnp.float32):
    """Anchor-mixture linear layer.

    x:     (..., Cin)
    alpha: (..., A)
    w:     (A, Cin, Cout)
    b:     (A, Cout) or None
    returns (..., Cout) == sum_a alpha[..., a] * (x @ w[a] + b[a])
    """
    lead = x.shape[:-1]
    Cin = x.shape[-1]
    A, _, Cout = w.shape

    x2 = x.reshape(-1, Cin)
    a2 = alpha.reshape(-1, A)
    B = x2.shape[0]

    # ---- Fold anchors (and bias) into the MXU K dimension (K-stacking) ----
    if b is not None:
        x_aug = jnp.concatenate([x2, jnp.ones((B, 1), x2.dtype)], axis=1)  # (B, Cin+1)
        w_aug = jnp.concatenate([w, b[:, None, :]], axis=1)                # (A, Cin+1, Cout)
    else:
        x_aug = x2
        w_aug = w
    Ka = x_aug.shape[1]
    K = A * Ka

    # z[b, a*Ka + i] = alpha[b, a] * x_aug[b, i]   (cheap elementwise; A is small)
    z = (a2[:, :, None].astype(compute_dtype)
         * x_aug[:, None, :].astype(compute_dtype)).reshape(B, K)
    w_flat = w_aug.reshape(K, Cout).astype(compute_dtype)

    out = _tiled_matmul_f32(z, w_flat)           # (B, Cout), f32
    return out.astype(x.dtype).reshape(*lead, Cout)


def init_params(key, n_anchors, in_channels, out_channels, same_init=False):
    """nn.Linear-style init: U(-1/sqrt(fan_in), 1/sqrt(fan_in)) for W and b."""
    bound = 1.0 / jnp.sqrt(in_channels)
    kw, kb = jax.random.split(key)
    if same_init:
        w1 = jax.random.uniform(kw, (1, in_channels, out_channels),
                                minval=-bound, maxval=bound, dtype=jnp.float32)
        b1 = jax.random.uniform(kb, (1, out_channels),
                                minval=-bound, maxval=bound, dtype=jnp.float32)
        w = jnp.tile(w1, (n_anchors, 1, 1))
        b = jnp.tile(b1, (n_anchors, 1))
    else:
        w = jax.random.uniform(kw, (n_anchors, in_channels, out_channels),
                               minval=-bound, maxval=bound, dtype=jnp.float32)
        b = jax.random.uniform(kb, (n_anchors, out_channels),
                               minval=-bound, maxval=bound, dtype=jnp.float32)
    return w, b


if __name__ == "__main__":
    n_anchors, C_in, C_out = 4, 32, 16
    lead = (2, 4)                                   # arbitrary leading batch dims

    key = jax.random.PRNGKey(0)
    kp, kx, ka = jax.random.split(key, 3)

    w, b = init_params(kp, n_anchors, C_in, C_out, same_init=False)
    x = jax.random.normal(kx, (*lead, C_in), dtype=jnp.float32)
    alpha = jax.nn.softmax(
        jax.random.normal(ka, (*lead, n_anchors), dtype=jnp.float32), axis=-1)

    out = mix_linear(x, alpha, w, b)
    out = jax.block_until_ready(out)

    # Pure-JAX reference of the PyTorch forward.
    ys = jnp.einsum("...i,aio->...ao", x, w) + b       # (..., A, Cout)
    ref = (ys * alpha[..., :, None]).sum(axis=-2)      # (..., Cout)

    assert out.shape == (*lead, C_out)
    assert jnp.allclose(out, ref, atol=1e-4, rtol=1e-4)
    print("KERNEL_OK")
</pallas_src>

<mosaic_0001>
module attributes {stable_mosaic.version = 11 : i64} {
  func.func @_matmul_kernel(%arg0: i32, %arg1: i32, %arg2: i32, %arg3: memref<8x132xf32, #tpu.memory_space<vmem>>, %arg4: memref<132x128xf32, #tpu.memory_space<vmem>>, %arg5: memref<8x128xf32, #tpu.memory_space<vmem>>) attributes {dimension_semantics = [#tpu.dimension_semantics<parallel>, #tpu.dimension_semantics<parallel>, #tpu.dimension_semantics<arbitrary>], iteration_bounds = array<i64: 1, 1, 1>, scalar_prefetch = 0 : i64, scratch_operands = 0 : i64, tpu.core_type = #tpu.core_type<tc>, window_params = [{transform_indices = @transform_0, window_bounds = array<i64: 8, 132>}, {transform_indices = @transform_1, window_bounds = array<i64: 132, 128>}, {transform_indices = @transform_2, window_bounds = array<i64: 8, 128>}]} {
    %c0_i32 = arith.constant 0 : i32
    %0 = arith.cmpi eq, %arg2, %c0_i32 : i32
    %1 = arith.extui %0 : i1 to i32
    %c0_i32_0 = arith.constant 0 : i32
    %2 = arith.cmpi ne, %1, %c0_i32_0 : i32
    scf.if %2 {
      %cst_8 = arith.constant 0.000000e+00 : f32
      %9 = vector.broadcast %cst_8 : f32 to vector<8x128xf32>
      %c0_9 = arith.constant 0 : index
      %c0_10 = arith.constant 0 : index
      %10 = vector.load %arg5[%c0_9, %c0_10] : memref<8x128xf32, #tpu.memory_space<vmem>>, vector<8x128xf32>
      tpu.vector_store %arg5[%c0_9, %c0_10], %9 {strides = array<i32>} : memref<8x128xf32, #tpu.memory_space<vmem>>, vector<8x128xf32>,
    } else {
    }
    %c0 = arith.constant 0 : index
    %c0_1 = arith.constant 0 : index
    %3 = vector.load %arg5[%c0, %c0_1] : memref<8x128xf32, #tpu.memory_space<vmem>>, vector<8x128xf32>
    %c0_2 = arith.constant 0 : index
    %c0_3 = arith.constant 0 : index
    %4 = vector.load %arg3[%c0_2, %c0_3] : memref<8x132xf32, #tpu.memory_space<vmem>>, vector<8x132xf32>
    %c0_4 = arith.constant 0 : index
    %c0_5 = arith.constant 0 : index
    %5 = vector.load %arg4[%c0_4, %c0_5] : memref<132x128xf32, #tpu.memory_space<vmem>>, vector<132x128xf32>
    %cst = arith.constant dense<0.000000e+00> : vector<8x128xf32>
    %6 = tpu.matmul %4, %5, %cst {dimension_numbers = #tpu.dot_dimension_numbers<[1], [0], [0], [1], [0, 0, 1, 1], [], []>} : vector<8x132xf32>, vector<132x128xf32>, vector<8x128xf32> -> vector<8x128xf32>
    %7 = arith.addf %3, %6 : vector<8x128xf32>
    %c0_6 = arith.constant 0 : index
    %c0_7 = arith.constant 0 : index
    %8 = vector.load %arg5[%c0_6, %c0_7] : memref<8x128xf32, #tpu.memory_space<vmem>>, vector<8x128xf32>
    tpu.vector_store %arg5[%c0_6, %c0_7], %7 {strides = array<i32>} : memref<8x128xf32, #tpu.memory_space<vmem>>, vector<8x128xf32>,
    return
  }
  func.func @transform_0(%arg0: i32, %arg1: i32, %arg2: i32) -> (i32, i32) {
    %c0_i32 = arith.constant 0 : i32
    return %arg0, %arg2 : i32, i32
  }
  func.func @transform_1(%arg0: i32, %arg1: i32, %arg2: i32) -> (i32, i32) {
    %c0_i32 = arith.constant 0 : i32
    return %arg2, %arg1 : i32, i32
  }
  func.func @transform_2(%arg0: i32, %arg1: i32, %arg2: i32) -> (i32, i32) {
    %c0_i32 = arith.constant 0 : i32
    return %arg0, %arg1 : i32, i32
  }
}

</mosaic_0001>

<llo_original>
// kernel: tpu_custom_call.1
$region0: #{tpu_custom_call.1}
  #allocation0 [shape = 'u32[]', space=smem, size = 0x4, offset = 0x4, fixed_abs, tag = 'smem constant byte address 0x4 - core index']
  #allocation1 [shape = 'u32[144,128]{1,0:T(1,128)}', space=vmem, size = 0x12000, scoped, tag = 'internal scratch']
  %s0 = inlined_call_operand.hbm [shape: f32[8,132], index: 0, kind: input, shape index: {}]
  %s1 = inlined_call_operand.hbm [shape: f32[132,128], index: 1, kind: input, shape index: {}]
  %s2 = inlined_call_operand.hbm [shape: f32[8,128], index: 2, kind: output, shape index: {}]
  %s3 = sld [smem:[#allocation0]]
  $region30: #{tpu_custom_call.1} parent=0
    _
  %s5 = ssub.s32 1, %s3
  %s6 = scalar_select 0, %s5, %s3
  $region1: #{tpu_custom_call.1} parent=0
    #allocation2 [shape = 'u8[8192]{0}', space=vmem, size = 0x2000, scoped, tag = 'input window, operand 0, single buffered']
    #allocation3 [shape = 's32[1]{0}', space=sflag, size = 0x4, scoped, tag = 'scoped memory for tpu_custom_call.1']
    #allocation4 [shape = 's32[1]{0}', space=sflag, size = 0x4, scoped, tag = 'scoped memory for tpu_custom_call.1']
    #allocation5 [shape = 'u8[69632]{0}', space=vmem, size = 0x11000, scoped, tag = 'input window, operand 1, single buffered']
    #allocation6 [shape = 's32[1]{0}', space=sflag, size = 0x4, scoped, tag = 'scoped memory for tpu_custom_call.1']
    #allocation7 [shape = 'u8[4096]{0}', space=vmem, size = 0x1000, scoped, tag = 'output window, operand 0, single buffered']
    %7 = vsyncpa [#allocation3], 0
    %8 = vsyncpa [#allocation6], 0
    %9 = vsyncpa [#allocation4], 0
    // Predicated region
    $region2: #{tpu_custom_call.1} parent=1 // pred_check
      _
    $region3: #{tpu_custom_call.1} parent=1 // pred_check_branch
      %11 = sbr.rel (0) target = $region5
    $region4: #{tpu_custom_call.1} parent=1 // pred_region
      %s13 = ssub.s32 256, 256
      %14 = vsyncadd [#allocation3], %s13
      %s16 = sshll.u32 [#allocation2], 4
      %s17 = int_to_ptr.vmem [resolvable:$true] %s16
      %19 = dma.hbm_to_vmem [thread:$0]  %s0, 256, %s17, [#allocation3]
    $region5: #{tpu_custom_call.1} parent=1 // pred_fallthru
      _
    // Predicated region
    $region6: #{tpu_custom_call.1} parent=1 // pred_check
      _
    $region7: #{tpu_custom_call.1} parent=1 // pred_check_branch
      %21 = sbr.rel (0) target = $region9
    $region8: #{tpu_custom_call.1} parent=1 // pred_region
      %s23 = ssub.s32 2176, 2176
      %24 = vsyncadd [#allocation6], %s23
      %s25 = sshll.u32 [#allocation5], 4
      %s26 = int_to_ptr.vmem [resolvable:$true] %s25
      %31 = dma.hbm_to_vmem [thread:$0]  %s1, 2176, %s26, [#allocation6], 128, 128, 8
    $region9: #{tpu_custom_call.1} parent=1 // pred_fallthru
      _
    // Predicated region
    $region10: #{tpu_custom_call.1} parent=1 // pred_check
      _
    $region11: #{tpu_custom_call.1} parent=1 // pred_check_branch
      %33 = sbr.rel (0) target = $region13
    $region12: #{tpu_custom_call.1} parent=1 // pred_region
      %34 = dma.done [#allocation3], 256
    $region13: #{tpu_custom_call.1} parent=1 // pred_fallthru
      _
    // Predicated region
    $region14: #{tpu_custom_call.1} parent=1 // pred_check
      _
    $region15: #{tpu_custom_call.1} parent=1 // pred_check_branch
      %36 = sbr.rel (0) target = $region17
    $region16: #{tpu_custom_call.1} parent=1 // pred_region
      %37 = dma.done [#allocation6], 2176
    $region17: #{tpu_custom_call.1} parent=1 // pred_fallthru
      _
    %p38 = scmp.eq.s32.totalorder 0, 0
    // Predicated region
    $region18: #{tpu_custom_call.1} parent=1 // pred_check
      %p39 = pneg %p38
    $region19: #{tpu_custom_call.1} parent=1 // pred_check_branch
      %41 = sbr.rel (%p39) target = $region21
    $region20: #{tpu_custom_call.1} parent=1 // pred_region
      %42 = vst [vmem:[#allocation7] sm:$0xff] 0.0
    $region21: #{tpu_custom_call.1} parent=1 // pred_fallthru
      _
    %v43 = vld [vmem:[#allocation7] sm:$0xff]
    %v44 = vld [vmem:[#allocation2] sm:$0xff]
    %v45 = vld [vmem:[#allocation2 + $0x8] sm:$0xff]
    %v46 = vld [vmem:[#allocation5] sm:$0xff]
    %v47 = vld [vmem:[#allocation5 + $0x8] sm:$0xff]
    %v48 = vld [vmem:[#allocation5 + $0x10] sm:$0xff]
    %v49 = vld [vmem:[#allocation5 + $0x18] sm:$0xff]
    %v50 = vld [vmem:[#allocation5 + $0x20] sm:$0xff]
    %v51 = vld [vmem:[#allocation5 + $0x28] sm:$0xff]
    %v52 = vld [vmem:[#allocation5 + $0x30] sm:$0xff]
    %v53 = vld [vmem:[#allocation5 + $0x38] sm:$0xff]
    %v54 = vld [vmem:[#allocation5 + $0x40] sm:$0xff]
    %v55 = vld [vmem:[#allocation5 + $0x48] sm:$0xff]
    %v56 = vld [vmem:[#allocation5 + $0x50] sm:$0xff]
    %v57 = vld [vmem:[#allocation5 + $0x58] sm:$0xff]
    %v58 = vld [vmem:[#allocation5 + $0x60] sm:$0xff]
    %v59 = vld [vmem:[#allocation5 + $0x68] sm:$0xff]
    %v60 = vld [vmem:[#allocation5 + $0x70] sm:$0xff]
    %v61 = vld [vmem:[#allocation5 + $0x78] sm:$0xff]
    %v62 = vld [vmem:[#allocation5 + $0x80] sm:$0xf]
    %vm63 = vcmask 31744
    %v65 = vsel %vm63, %v45, 0
    %vm67 = vcmask 1043456
    %v69 = vsel %vm67, %v62, 0
    %71 = vmatprep.subr.mxu0 0.0
    %72 = vmatpush1.msra.mxu0 %v61
    %73 = vmatprep.subr.mxu0 0.0
    %74 = vmatpush1.msra.mxu0 %v60
    %75 = vmatprep.subr.mxu0 0.0
    %76 = vmatpush1.msra.mxu0 %v59
    %77 = vmatprep.subr.mxu0 0.0
    %78 = vmatpush1.msra.mxu0 %v58
    %79 = vmatprep.subr.mxu0 0.0
    %80 = vmatpush1.msra.mxu0 %v57
    %81 = vmatprep.subr.mxu0 0.0
    %82 = vmatpush1.msra.mxu0 %v56
    %83 = vmatprep.subr.mxu0 0.0
    %84 = vmatpush1.msra.mxu0 %v55
    %85 = vmatprep.subr.mxu0 0.0
    %86 = vmatpush1.msra.mxu0 %v54
    %87 = vmatprep.subr.mxu0 0.0
    %88 = vmatpush1.msra.mxu0 %v53
    %89 = vmatprep.subr.mxu0 0.0
    %90 = vmatpush1.msra.mxu0 %v52
    %91 = vmatprep.subr.mxu0 0.0
    %92 = vmatpush1.msra.mxu0 %v51
    %93 = vmatprep.subr.mxu0 0.0
    %94 = vmatpush1.msra.mxu0 %v50
    %95 = vmatprep.subr.mxu0 0.0
    %96 = vmatpush1.msra.mxu0 %v49
    %97 = vmatprep.subr.mxu0 0.0
    %98 = vmatpush1.msra.mxu0 %v48
    %99 = vmatprep.subr.mxu0 0.0
    %100 = vmatpush1.msra.mxu0 %v47
    %101 = vmatprep.subr.mxu0 0.0
    %102 = vmatpush1.msra.mxu0 %v46
    %103 = vmatprep.subr.mxu0 0.0
    %104 = vmatpush2.msra.mxu0 0.0
    %105 = vmatprep.subr.mxu0 0.0
    %106 = vmatpush2.msra.mxu0 0.0
    %107 = vmatprep.subr.mxu0 0.0
    %108 = vmatpush2.msra.mxu0 0.0
    %109 = vmatprep.subr.mxu0 0.0
    %110 = vmatpush2.msra.mxu0 0.0
    %111 = vmatprep.subr.mxu0 0.0
    %112 = vmatpush2.msra.mxu0 0.0
    %113 = vmatprep.subr.mxu0 0.0
    %114 = vmatpush2.msra.mxu0 0.0
    %115 = vmatprep.subr.mxu0 0.0
    %116 = vmatpush2.msra.mxu0 0.0
    %117 = vmatprep.subr.mxu0 0.0
    %118 = vmatpush2.msra.mxu0 0.0
    %119 = vmatprep.subr.mxu0 0.0
    %120 = vmatpush2.msra.mxu0 0.0
    %121 = vmatprep.subr.mxu0 0.0
    %122 = vmatpush2.msra.mxu0 0.0
    %123 = vmatprep.subr.mxu0 0.0
    %124 = vmatpush2.msra.mxu0 0.0
    %125 = vmatprep.subr.mxu0 0.0
    %126 = vmatpush2.msra.mxu0 0.0
    %127 = vmatprep.subr.mxu0 0.0
    %128 = vmatpush2.msra.mxu0 0.0
    %129 = vmatprep.subr.mxu0 0.0
    %130 = vmatpush2.msra.mxu0 0.0
    %131 = vmatprep.subr.mxu0 0.0
    %132 = vmatpush2.msra.mxu0 0.0
    %133 = vmatprep.subr.mxu0 0.0
    %134 = vmatpush2.msra.mxu0 %v69
    %135 = vmatprep.mubr.f32.mxu0 %v65
    %136 = vmatmul.mubr.f32.gmra.mxu0 %v44
    %v137 = vpop.f32.mrf.mxu0
    %v138 = vadd.f32 0.0, %v137
    %v139 = vpop.f32.mrf.mxu0
    %140 = vdwg.mxu0
    %v141 = vadd.f32 %v43, %v138
    %142 = vst [vmem:[#allocation7] sm:$0xff] %v141
    // Predicated region
    $region22: #{tpu_custom_call.1} parent=1 // pred_check
      _
    $region23: #{tpu_custom_call.1} parent=1 // pred_check_branch
      %144 = sbr.rel (0) target = $region25
    $region24: #{tpu_custom_call.1} parent=1 // pred_region
      %s146 = ssub.s32 128, 128
      %147 = vsyncadd [#allocation4], %s146
      %s149 = sshll.u32 [#allocation7], 4
      %s150 = int_to_ptr.vmem [resolvable:$true] %s149
      %152 = dma.vmem_to_hbm [thread:$0]  %s150, 128, %s2, [#allocation4]
    $region25: #{tpu_custom_call.1} parent=1 // pred_fallthru
      _
    // Predicated region
    $region26: #{tpu_custom_call.1} parent=1 // pred_check
      _
    $region27: #{tpu_custom_call.1} parent=1 // pred_check_branch
      %154 = sbr.rel (0) target = $region29
    $region28: #{tpu_custom_call.1} parent=1 // pred_region
      %155 = dma.done [#allocation4], 128
    $region29: #{tpu_custom_call.1} parent=1 // pred_fallthru
      _
    %156 = vsyncpa [#allocation3], 1
    %157 = vsyncpa [#allocation6], 1
    %158 = vsyncpa [#allocation4], 1

</llo_original>
